<compile_context>
chip_gen: v7x
topology: tpu7x:2x2x1
jax: 0.10.0
libtpu: 0.0.40
codegen_flags: <defaults>
</compile_context>

<pallas_src>
import jax
import jax.numpy as jnp
from jax.experimental import pallas as pl
from jax.experimental.pallas import tpu as pltpu


_NEG_INF = -1e30          # finite "minus infinity": avoids -inf/NaN corners
_INT_MIN = -(2 ** 31)     # sentinel for exhausted / padded lanes (int32 min)


def _round_up(x: int, m: int) -> int:
    return ((x + m - 1) // m) * m


def _make_gate_kernel(n_experts, topk, score_func, has_bias, route_scale,
                      low_mask):
    """Builds a kernel specialized on static gate configuration.

    low_mask: (next_pow2(E_pad) - 1); the low bits of the int32 sort key hold
    the (reversed) lane index, the high bits hold the truncated score.
    """
    hi_mask = ~low_mask                 # clears the index bits of the key
    deferred = not has_bias             # select on raw logits, score later

    def kernel(x_ref, w_ref, *rest):
        if has_bias:
            b_ref, w_out_ref, i_out_ref = rest
        else:
            w_out_ref, i_out_ref = rest

        # ---- linear: (tm, K) @ (K, E_pad) on the MXU, f32 accumulation ----
        logits = jnp.dot(
            x_ref[...], w_ref[...], preferred_element_type=jnp.float32
        )  # (tm, E_pad) f32

        col = jax.lax.broadcasted_iota(jnp.int32, logits.shape, 1)
        valid = col < n_experts                      # mask lane padding

        if deferred:
            # softmax / sigmoid are monotone -> run top-k directly on the
            # logits; only the k selected values are scored afterwards.
            sel = logits
            probs = None
        else:
            # bias path (dim == 7168): score first, add bias for selection,
            # gather routing weights from the un-biased scores.
            if score_func == "softmax":
                mrow = jnp.max(jnp.where(valid, logits, _NEG_INF),
                               axis=-1, keepdims=True)
                e = jnp.where(valid, jnp.exp(logits - mrow), 0.0)
                denom = jnp.sum(e, axis=-1, keepdims=True)
                probs = e * pl.reciprocal(denom, approx=True)
            else:  # 'sigmoid'
                probs = jnp.where(valid, jax.nn.sigmoid(logits), 0.0)
            sel = probs + b_ref[...].astype(jnp.float32)

        # ---- pack (value, lane index) into ONE monotone int32 key ---------
        # f32 -> totally-ordered int32, clear the low index bits, OR in the
        # reversed lane index so ties break toward the lowest expert index.
        bits = pltpu.bitcast(sel, jnp.int32)
        key = jnp.where(bits >= 0, bits, bits ^ jnp.int32(0x7FFFFFFF))
        key = (key & jnp.int32(hi_mask)) | (low_mask - col)
        key = jnp.where(valid, key, _INT_MIN)

        # ---- iterative top-k: ONE max-reduction per k ----------------------
        out_col = jax.lax.broadcasted_iota(jnp.int32, i_out_ref.shape, 1)
        w_acc = jnp.zeros(w_out_ref.shape, jnp.float32)
        i_acc = jnp.zeros(i_out_ref.shape, jnp.int32)

        work = key
        m_row = None
        inv = None
        for k in range(topk):
            kmax = jnp.max(work, axis=-1, keepdims=True)       # (tm, 1) XLU
            idx = low_mask - (kmax & low_mask)                  # argmax lane
            vbits = kmax & jnp.int32(hi_mask)
            vbits = jnp.where(vbits >= 0, vbits,
                              vbits ^ jnp.int32(0x7FFFFFFF))
            val = pltpu.bitcast(vbits, jnp.float32)             # trunc. score

            if deferred and score_func == "softmax":
                if k == 0:
                    # k==0 max doubles as the softmax row max; one sum
                    # reduction + approx reciprocal give the denominator.
                    m_row = val
                    e = jnp.where(valid, jnp.exp(logits - m_row), 0.0)
                    denom = jnp.sum(e, axis=-1, keepdims=True)
                    inv = pl.reciprocal(denom, approx=True)
                wk = jnp.exp(val - m_row) * inv                 # (tm, 1)
            elif deferred:  # sigmoid, no bias
                wk = jax.nn.sigmoid(val)
            else:           # bias path: gather un-biased score of the winner
                wk = jnp.sum(jnp.where(col == idx, probs, 0.0),
                             axis=-1, keepdims=True)

            w_acc = jnp.where(out_col == k, wk, w_acc)
            i_acc = jnp.where(out_col == k, idx, i_acc)
            work = jnp.where(col == idx, _INT_MIN, work)        # knock out

        w_out_ref[...] = (w_acc * route_scale).astype(w_out_ref.dtype)
        i_out_ref[...] = i_acc

    return kernel


def pallas_gate(x, w_packed, n_experts, topk, *, bias_packed=None,
                score_func="softmax", route_scale=1.0, tm=512):
    """Fused gate forward.

    x:         (..., dim)             activations
    w_packed:  (dim, E_pad)           pre-transposed, lane-padded gate weight
    returns:   weights (..., topk) in x.dtype, indices (..., topk) int32
    """
    dim, e_pad = w_packed.shape
    lead = x.shape[:-1]
    M = 1
    for d in lead:
        M *= d
    x2d = x.reshape(M, dim)

    # Stream activations as bf16 (halves HBM traffic); MXU accumulates in f32.
    if x2d.dtype != jnp.bfloat16:
        x2d = x2d.astype(jnp.bfloat16)

    # Row tile: large, 16-aligned; pad M up instead of collapsing the grid.
    tm = min(tm, _round_up(max(M, 1), 16))
    # v7x megacore: if all rows fit one tile but there is enough work, split
    # into two tiles so both TensorCores participate ("parallel" grid axis).
    if 256 < M <= tm:
        tm = _round_up((M + 1) // 2, 16)
    m_pad = _round_up(max(M, 1), tm)
    if m_pad != M:
        x2d = jnp.pad(x2d, ((0, m_pad - M), (0, 0)))
    grid = (m_pad // tm,)

    x_spec = pl.BlockSpec((tm, dim), lambda i: (i, 0))
    w_spec = pl.BlockSpec((dim, e_pad), lambda i: (0, 0))   # resident weight
    w_out_spec = pl.BlockSpec((tm, topk), lambda i: (i, 0))
    i_out_spec = pl.BlockSpec((tm, topk), lambda i: (i, 0))

    in_specs = [x_spec, w_spec]
    args = [x2d, w_packed]
    has_bias = bias_packed is not None
    if has_bias:
        in_specs.append(pl.BlockSpec((1, e_pad), lambda i: (0, 0)))
        args.append(bias_packed.reshape(1, e_pad))

    low_mask = pl.next_power_of_2(e_pad) - 1
    kernel = _make_gate_kernel(n_experts, topk, score_func, has_bias,
                               route_scale, low_mask)

    out_dtype = x.dtype
    cost = pl.CostEstimate(
        flops=2 * m_pad * dim * e_pad,
        transcendentals=m_pad * e_pad,
        bytes_accessed=(m_pad * dim * 2
                        + dim * e_pad * w_packed.dtype.itemsize
                        + m_pad * topk * (jnp.dtype(out_dtype).itemsize + 4)),
    )

    out_w, out_i = pl.pallas_call(
        kernel,
        out_shape=(jax.ShapeDtypeStruct((m_pad, topk), out_dtype),
                   jax.ShapeDtypeStruct((m_pad, topk), jnp.int32)),
        grid_spec=pltpu.PrefetchScalarGridSpec(
            num_scalar_prefetch=0,
            grid=grid,
            in_specs=in_specs,
            out_specs=[w_out_spec, i_out_spec],
        ),
        compiler_params=pltpu.CompilerParams(
            dimension_semantics=("parallel",),
        ),
        cost_estimate=cost,
    )(*args)

    out_w = out_w[:M].reshape(*lead, topk)
    out_i = out_i[:M].reshape(*lead, topk)
    return out_w, out_i


class PallasGate:
    """JAX/Pallas equivalent of the PyTorch `Gate` module."""

    def __init__(self, dim, n_routed_experts, n_activated_experts,
                 n_expert_groups=1, n_limited_groups=1,
                 score_func="softmax", route_scale=1.0,
                 dtype=jnp.bfloat16, key=None):
        if key is None:
            key = jax.random.PRNGKey(0)
        k_w, k_b = jax.random.split(key)
        self.dim = dim
        self.n_experts = n_routed_experts
        self.topk = n_activated_experts
        self.n_groups = n_expert_groups
        self.topk_groups = n_limited_groups
        self.score_func = score_func
        self.route_scale = route_scale

        # torch.randn(E, dim) parameter, stored in the compute dtype
        self.weight = jax.random.normal(
            k_w, (n_routed_experts, dim), dtype=jnp.float32).astype(dtype)
        # bias exists only for dim == 7168 (matches the PyTorch module)
        self.bias = (jax.random.normal(k_b, (n_routed_experts,), jnp.float32)
                     if dim == 7168 else None)

        # Pre-transpose + lane-pad the gate weight ONCE: the kernel sees
        # (dim, E_pad) with E_pad a multiple of 128 (kept at 128 for E=64;
        # padding further would only widen every vector op).
        e_pad = _round_up(n_routed_experts, 128)
        w_t = jnp.transpose(self.weight).astype(dtype)            # (dim, E)
        self.w_packed = jnp.pad(w_t, ((0, 0), (0, e_pad - n_routed_experts)))
        self.bias_packed = (
            jnp.pad(self.bias, (0, e_pad - n_routed_experts)).astype(jnp.float32)
            if self.bias is not None else None)

    def __call__(self, x):
        if self.n_groups > 1:
            # TODO(synk): group-limited routing (n_expert_groups > 1) not
            # implemented; default ModelArgs uses a single expert group.
            raise NotImplementedError("n_expert_groups > 1 not supported")
        return pallas_gate(
            x, self.w_packed, self.n_experts, self.topk,
            bias_packed=self.bias_packed,
            score_func=self.score_func, route_scale=self.route_scale)


if __name__ == "__main__":
    key = jax.random.PRNGKey(0)
    k_x, k_m = jax.random.split(key)

    # Small shapes consistent with the Gate: tokens = batch*seq flattened.
    tokens, dim, n_experts, topk = 16, 256, 64, 6
    x = jax.random.normal(k_x, (tokens, dim), jnp.float32).astype(jnp.bfloat16)

    gate = PallasGate(dim=dim, n_routed_experts=n_experts,
                      n_activated_experts=topk, key=k_m)
    weights, indices = gate(x)
    weights = jax.block_until_ready(weights)
    indices = jax.block_until_ready(indices)

    # Pure-JAX reference (same semantics as the torch module with defaults:
    # softmax scoring, no bias, single expert group, route_scale=1.0).
    logits = jnp.dot(x.astype(jnp.float32), gate.weight.T.astype(jnp.float32))
    probs = jax.nn.softmax(logits, axis=-1)
    ref_w, ref_i = jax.lax.top_k(probs, topk)

    assert weights.shape == (tokens, topk) and indices.shape == (tokens, topk)
    assert weights.dtype == x.dtype and indices.dtype == jnp.int32

    w_f32 = weights.astype(jnp.float32)
    # Top-k values match the reference top-k values (robust to tie ordering).
    assert jnp.allclose(w_f32, ref_w, atol=2e-2, rtol=2e-2)
    # Returned weight equals the softmax prob of the returned expert index.
    gathered = jnp.take_along_axis(probs, indices, axis=-1)
    assert jnp.allclose(w_f32, gathered, atol=2e-2, rtol=2e-2)
    # Indices are valid and unique per row.
    assert bool(jnp.all((indices >= 0) & (indices < n_experts)))
    srt = jnp.sort(indices, axis=-1)
    assert bool(jnp.all(srt[:, 1:] != srt[:, :-1]))

    print("KERNEL_OK")
</pallas_src>

<mosaic_0001>
module attributes {stable_mosaic.version = 11 : i64} {
  func.func @kernel(%arg0: i32, %arg1: memref<16x256xbf16, #tpu.memory_space<vmem>>, %arg2: memref<256x128xbf16, #tpu.memory_space<vmem>>, %arg3: memref<16x6xbf16, #tpu.memory_space<vmem>>, %arg4: memref<16x6xi32, #tpu.memory_space<vmem>>) attributes {dimension_semantics = [#tpu.dimension_semantics<parallel>], iteration_bounds = array<i64: 1>, scalar_prefetch = 0 : i64, scratch_operands = 0 : i64, tpu.core_type = #tpu.core_type<tc>, window_params = [{transform_indices = @transform_0, window_bounds = array<i64: 16, 256>}, {pipeline_mode = #tpu.pipeline_mode<synchronous>, transform_indices = @transform_1, window_bounds = array<i64: 256, 128>}, {transform_indices = @transform_2, window_bounds = array<i64: 16, 6>}, {transform_indices = @transform_3, window_bounds = array<i64: 16, 6>}]} {
    %c0 = arith.constant 0 : index
    %c0_0 = arith.constant 0 : index
    %0 = vector.load %arg1[%c0, %c0_0] : memref<16x256xbf16, #tpu.memory_space<vmem>>, vector<16x256xbf16>
    %c0_1 = arith.constant 0 : index
    %c0_2 = arith.constant 0 : index
    %1 = vector.load %arg2[%c0_1, %c0_2] : memref<256x128xbf16, #tpu.memory_space<vmem>>, vector<256x128xbf16>
    %cst = arith.constant dense<0.000000e+00> : vector<16x128xf32>
    %2 = tpu.matmul %0, %1, %cst {dimension_numbers = #tpu.dot_dimension_numbers<[1], [0], [0], [1], [0, 0, 1, 1], [], []>} : vector<16x256xbf16>, vector<256x128xbf16>, vector<16x128xf32> -> vector<16x128xf32>
    %3 = tpu.iota {dimensions = array<i32: 1>} : vector<16x128xi32>
    %c64_i32 = arith.constant 64 : i32
    %4 = vector.broadcast %c64_i32 : i32 to vector<16x128xi32>
    %5 = arith.cmpi slt, %3, %4 : vector<16x128xi32>
    %6 = tpu.bitcast %2 : vector<16x128xf32> -> vector<16x128xi32>
    %c0_i32 = arith.constant 0 : i32
    %7 = vector.broadcast %c0_i32 : i32 to vector<16x128xi32>
    %8 = arith.cmpi sge, %6, %7 : vector<16x128xi32>
    %c2147483647_i32 = arith.constant 2147483647 : i32
    %9 = vector.broadcast %c2147483647_i32 : i32 to vector<16x128xi32>
    %10 = arith.xori %6, %9 : vector<16x128xi32>
    %11 = arith.select %8, %6, %10 : vector<16x128xi1>, vector<16x128xi32>
    %c-128_i32 = arith.constant -128 : i32
    %12 = vector.broadcast %c-128_i32 : i32 to vector<16x128xi32>
    %13 = arith.andi %11, %12 : vector<16x128xi32>
    %c127_i32 = arith.constant 127 : i32
    %14 = vector.broadcast %c127_i32 : i32 to vector<16x128xi32>
    %15 = arith.subi %14, %3 : vector<16x128xi32>
    %16 = arith.ori %13, %15 : vector<16x128xi32>
    %c-2147483648_i32 = arith.constant -2147483648 : i32
    %17 = vector.broadcast %c-2147483648_i32 : i32 to vector<16x128xi32>
    %18 = arith.select %5, %16, %17 : vector<16x128xi1>, vector<16x128xi32>
    %19 = tpu.iota {dimensions = array<i32: 1>} : vector<16x6xi32>
    %cst_3 = arith.constant 0.000000e+00 : f32
    %20 = vector.broadcast %cst_3 : f32 to vector<16x6xf32>
    %c0_i32_4 = arith.constant 0 : i32
    %21 = vector.broadcast %c0_i32_4 : i32 to vector<16x6xi32>
    %cst_5 = arith.constant dense<-2147483648> : vector<16xi32>
    %22 = vector.multi_reduction <maxsi>, %18, %cst_5 [1] : vector<16x128xi32> to vector<16xi32>
    %23 = vector.shape_cast %22 : vector<16xi32> to vector<16x1xi32>
    %c127_i32_6 = arith.constant 127 : i32
    %24 = vector.broadcast %c127_i32_6 : i32 to vector<16x1xi32>
    %25 = arith.andi %23, %24 : vector<16x1xi32>
    %c127_i32_7 = arith.constant 127 : i32
    %26 = vector.broadcast %c127_i32_7 : i32 to vector<16x1xi32>
    %27 = arith.subi %26, %25 : vector<16x1xi32>
    %c-128_i32_8 = arith.constant -128 : i32
    %28 = vector.broadcast %c-128_i32_8 : i32 to vector<16x1xi32>
    %29 = arith.andi %23, %28 : vector<16x1xi32>
    %c0_i32_9 = arith.constant 0 : i32
    %30 = vector.broadcast %c0_i32_9 : i32 to vector<16x1xi32>
    %31 = arith.cmpi sge, %29, %30 : vector<16x1xi32>
    %c2147483647_i32_10 = arith.constant 2147483647 : i32
    %32 = vector.broadcast %c2147483647_i32_10 : i32 to vector<16x1xi32>
    %33 = arith.xori %29, %32 : vector<16x1xi32>
    %34 = arith.select %31, %29, %33 : vector<16x1xi1>, vector<16x1xi32>
    %35 = tpu.bitcast %34 : vector<16x1xi32> -> vector<16x1xf32>
    %36 = vector.broadcast %35 : vector<16x1xf32> to vector<16x128xf32>
    %37 = arith.subf %2, %36 : vector<16x128xf32>
    %38 = math.exp %37 : vector<16x128xf32>
    %cst_11 = arith.constant 0.000000e+00 : f32
    %39 = vector.broadcast %cst_11 : f32 to vector<16x128xf32>
    %40 = arith.select %5, %38, %39 : vector<16x128xi1>, vector<16x128xf32>
    %cst_12 = arith.constant dense<0.000000e+00> : vector<16xf32>
    %41 = vector.multi_reduction <add>, %40, %cst_12 [1] : vector<16x128xf32> to vector<16xf32>
    %42 = vector.shape_cast %41 : vector<16xf32> to vector<16x1xf32>
    %43 = tpu.reciprocal %42 {approx = true} : vector<16x1xf32> -> vector<16x1xf32>
    %44 = arith.subf %35, %35 : vector<16x1xf32>
    %45 = math.exp %44 : vector<16x1xf32>
    %46 = arith.mulf %45, %43 : vector<16x1xf32>
    %c0_i32_13 = arith.constant 0 : i32
    %47 = vector.broadcast %c0_i32_13 : i32 to vector<16x6xi32>
    %48 = arith.cmpi eq, %19, %47 : vector<16x6xi32>
    %49 = vector.shape_cast %46 : vector<16x1xf32> to vector<16x1xf32>
    %50 = vector.broadcast %49 : vector<16x1xf32> to vector<16x6xf32>
    %51 = arith.select %48, %50, %20 : vector<16x6xi1>, vector<16x6xf32>
    %c0_i32_14 = arith.constant 0 : i32
    %52 = vector.broadcast %c0_i32_14 : i32 to vector<16x6xi32>
    %53 = arith.cmpi eq, %19, %52 : vector<16x6xi32>
    %54 = vector.shape_cast %27 : vector<16x1xi32> to vector<16x1xi32>
    %55 = vector.broadcast %54 : vector<16x1xi32> to vector<16x6xi32>
    %56 = arith.select %53, %55, %21 : vector<16x6xi1>, vector<16x6xi32>
    %57 = vector.broadcast %27 : vector<16x1xi32> to vector<16x128xi32>
    %58 = arith.cmpi eq, %3, %57 : vector<16x128xi32>
    %c-2147483648_i32_15 = arith.constant -2147483648 : i32
    %59 = vector.broadcast %c-2147483648_i32_15 : i32 to vector<16x128xi32>
    %60 = arith.select %58, %59, %18 : vector<16x128xi1>, vector<16x128xi32>
    %cst_16 = arith.constant dense<-2147483648> : vector<16xi32>
    %61 = vector.multi_reduction <maxsi>, %60, %cst_16 [1] : vector<16x128xi32> to vector<16xi32>
    %62 = vector.shape_cast %61 : vector<16xi32> to vector<16x1xi32>
    %c127_i32_17 = arith.constant 127 : i32
    %63 = vector.broadcast %c127_i32_17 : i32 to vector<16x1xi32>
    %64 = arith.andi %62, %63 : vector<16x1xi32>
    %c127_i32_18 = arith.constant 127 : i32
    %65 = vector.broadcast %c127_i32_18 : i32 to vector<16x1xi32>
    %66 = arith.subi %65, %64 : vector<16x1xi32>
    %c-128_i32_19 = arith.constant -128 : i32
    %67 = vector.broadcast %c-128_i32_19 : i32 to vector<16x1xi32>
    %68 = arith.andi %62, %67 : vector<16x1xi32>
    %c0_i32_20 = arith.constant 0 : i32
    %69 = vector.broadcast %c0_i32_20 : i32 to vector<16x1xi32>
    %70 = arith.cmpi sge, %68, %69 : vector<16x1xi32>
    %c2147483647_i32_21 = arith.constant 2147483647 : i32
    %71 = vector.broadcast %c2147483647_i32_21 : i32 to vector<16x1xi32>
    %72 = arith.xori %68, %71 : vector<16x1xi32>
    %73 = arith.select %70, %68, %72 : vector<16x1xi1>, vector<16x1xi32>
    %74 = tpu.bitcast %73 : vector<16x1xi32> -> vector<16x1xf32>
    %75 = arith.subf %74, %35 : vector<16x1xf32>
    %76 = math.exp %75 : vector<16x1xf32>
    %77 = arith.mulf %76, %43 : vector<16x1xf32>
    %c1_i32 = arith.constant 1 : i32
    %78 = vector.broadcast %c1_i32 : i32 to vector<16x6xi32>
    %79 = arith.cmpi eq, %19, %78 : vector<16x6xi32>
    %80 = vector.shape_cast %77 : vector<16x1xf32> to vector<16x1xf32>
    %81 = vector.broadcast %80 : vector<16x1xf32> to vector<16x6xf32>
    %82 = arith.select %79, %81, %51 : vector<16x6xi1>, vector<16x6xf32>
    %c1_i32_22 = arith.constant 1 : i32
    %83 = vector.broadcast %c1_i32_22 : i32 to vector<16x6xi32>
    %84 = arith.cmpi eq, %19, %83 : vector<16x6xi32>
    %85 = vector.shape_cast %66 : vector<16x1xi32> to vector<16x1xi32>
    %86 = vector.broadcast %85 : vector<16x1xi32> to vector<16x6xi32>
    %87 = arith.select %84, %86, %56 : vector<16x6xi1>, vector<16x6xi32>
    %88 = vector.broadcast %66 : vector<16x1xi32> to vector<16x128xi32>
    %89 = arith.cmpi eq, %3, %88 : vector<16x128xi32>
    %c-2147483648_i32_23 = arith.constant -2147483648 : i32
    %90 = vector.broadcast %c-2147483648_i32_23 : i32 to vector<16x128xi32>
    %91 = arith.select %89, %90, %60 : vector<16x128xi1>, vector<16x128xi32>
    %cst_24 = arith.constant dense<-2147483648> : vector<16xi32>
    %92 = vector.multi_reduction <maxsi>, %91, %cst_24 [1] : vector<16x128xi32> to vector<16xi32>
    %93 = vector.shape_cast %92 : vector<16xi32> to vector<16x1xi32>
    %c127_i32_25 = arith.constant 127 : i32
    %94 = vector.broadcast %c127_i32_25 : i32 to vector<16x1xi32>
    %95 = arith.andi %93, %94 : vector<16x1xi32>
    %c127_i32_26 = arith.constant 127 : i32
    %96 = vector.broadcast %c127_i32_26 : i32 to vector<16x1xi32>
    %97 = arith.subi %96, %95 : vector<16x1xi32>
    %c-128_i32_27 = arith.constant -128 : i32
    %98 = vector.broadcast %c-128_i32_27 : i32 to vector<16x1xi32>
    %99 = arith.andi %93, %98 : vector<16x1xi32>
    %c0_i32_28 = arith.constant 0 : i32
    %100 = vector.broadcast %c0_i32_28 : i32 to vector<16x1xi32>
    %101 = arith.cmpi sge, %99, %100 : vector<16x1xi32>
    %c2147483647_i32_29 = arith.constant 2147483647 : i32
    %102 = vector.broadcast %c2147483647_i32_29 : i32 to vector<16x1xi32>
    %103 = arith.xori %99, %102 : vector<16x1xi32>
    %104 = arith.select %101, %99, %103 : vector<16x1xi1>, vector<16x1xi32>
    %105 = tpu.bitcast %104 : vector<16x1xi32> -> vector<16x1xf32>
    %106 = arith.subf %105, %35 : vector<16x1xf32>
    %107 = math.exp %106 : vector<16x1xf32>
    %108 = arith.mulf %107, %43 : vector<16x1xf32>
    %c2_i32 = arith.constant 2 : i32
    %109 = vector.broadcast %c2_i32 : i32 to vector<16x6xi32>
    %110 = arith.cmpi eq, %19, %109 : vector<16x6xi32>
    %111 = vector.shape_cast %108 : vector<16x1xf32> to vector<16x1xf32>
    %112 = vector.broadcast %111 : vector<16x1xf32> to vector<16x6xf32>
    %113 = arith.select %110, %112, %82 : vector<16x6xi1>, vector<16x6xf32>
    %c2_i32_30 = arith.constant 2 : i32
    %114 = vector.broadcast %c2_i32_30 : i32 to vector<16x6xi32>
    %115 = arith.cmpi eq, %19, %114 : vector<16x6xi32>
    %116 = vector.shape_cast %97 : vector<16x1xi32> to vector<16x1xi32>
    %117 = vector.broadcast %116 : vector<16x1xi32> to vector<16x6xi32>
    %118 = arith.select %115, %117, %87 : vector<16x6xi1>, vector<16x6xi32>
    %119 = vector.broadcast %97 : vector<16x1xi32> to vector<16x128xi32>
    %120 = arith.cmpi eq, %3, %119 : vector<16x128xi32>
    %c-2147483648_i32_31 = arith.constant -2147483648 : i32
    %121 = vector.broadcast %c-2147483648_i32_31 : i32 to vector<16x128xi32>
    %122 = arith.select %120, %121, %91 : vector<16x128xi1>, vector<16x128xi32>
    %cst_32 = arith.constant dense<-2147483648> : vector<16xi32>
    %123 = vector.multi_reduction <maxsi>, %122, %cst_32 [1] : vector<16x128xi32> to vector<16xi32>
    %124 = vector.shape_cast %123 : vector<16xi32> to vector<16x1xi32>
    %c127_i32_33 = arith.constant 127 : i32
    %125 = vector.broadcast %c127_i32_33 : i32 to vector<16x1xi32>
    %126 = arith.andi %124, %125 : vector<16x1xi32>
    %c127_i32_34 = arith.constant 127 : i32
    %127 = vector.broadcast %c127_i32_34 : i32 to vector<16x1xi32>
    %128 = arith.subi %127, %126 : vector<16x1xi32>
    %c-128_i32_35 = arith.constant -128 : i32
    %129 = vector.broadcast %c-128_i32_35 : i32 to vector<16x1xi32>
    %130 = arith.andi %124, %129 : vector<16x1xi32>
    %c0_i32_36 = arith.constant 0 : i32
    %131 = vector.broadcast %c0_i32_36 : i32 to vector<16x1xi32>
    %132 = arith.cmpi sge, %130, %131 : vector<16x1xi32>
    %c2147483647_i32_37 = arith.constant 2147483647 : i32
    %133 = vector.broadcast %c2147483647_i32_37 : i32 to vector<16x1xi32>
    %134 = arith.xori %130, %133 : vector<16x1xi32>
    %135 = arith.select %132, %130, %134 : vector<16x1xi1>, vector<16x1xi32>
    %136 = tpu.bitcast %135 : vector<16x1xi32> -> vector<16x1xf32>
    %137 = arith.subf %136, %35 : vector<16x1xf32>
    %138 = math.exp %137 : vector<16x1xf32>
    %139 = arith.mulf %138, %43 : vector<16x1xf32>
    %c3_i32 = arith.constant 3 : i32
    %140 = vector.broadcast %c3_i32 : i32 to vector<16x6xi32>
    %141 = arith.cmpi eq, %19, %140 : vector<16x6xi32>
    %142 = vector.shape_cast %139 : vector<16x1xf32> to vector<16x1xf32>
    %143 = vector.broadcast %142 : vector<16x1xf32> to vector<16x6xf32>
    %144 = arith.select %141, %143, %113 : vector<16x6xi1>, vector<16x6xf32>
    %c3_i32_38 = arith.constant 3 : i32
    %145 = vector.broadcast %c3_i32_38 : i32 to vector<16x6xi32>
    %146 = arith.cmpi eq, %19, %145 : vector<16x6xi32>
    %147 = vector.shape_cast %128 : vector<16x1xi32> to vector<16x1xi32>
    %148 = vector.broadcast %147 : vector<16x1xi32> to vector<16x6xi32>
    %149 = arith.select %146, %148, %118 : vector<16x6xi1>, vector<16x6xi32>
    %150 = vector.broadcast %128 : vector<16x1xi32> to vector<16x128xi32>
    %151 = arith.cmpi eq, %3, %150 : vector<16x128xi32>
    %c-2147483648_i32_39 = arith.constant -2147483648 : i32
    %152 = vector.broadcast %c-2147483648_i32_39 : i32 to vector<16x128xi32>
    %153 = arith.select %151, %152, %122 : vector<16x128xi1>, vector<16x128xi32>
    %cst_40 = arith.constant dense<-2147483648> : vector<16xi32>
    %154 = vector.multi_reduction <maxsi>, %153, %cst_40 [1] : vector<16x128xi32> to vector<16xi32>
    %155 = vector.shape_cast %154 : vector<16xi32> to vector<16x1xi32>
    %c127_i32_41 = arith.constant 127 : i32
    %156 = vector.broadcast %c127_i32_41 : i32 to vector<16x1xi32>
    %157 = arith.andi %155, %156 : vector<16x1xi32>
    %c127_i32_42 = arith.constant 127 : i32
    %158 = vector.broadcast %c127_i32_42 : i32 to vector<16x1xi32>
    %159 = arith.subi %158, %157 : vector<16x1xi32>
    %c-128_i32_43 = arith.constant -128 : i32
    %160 = vector.broadcast %c-128_i32_43 : i32 to vector<16x1xi32>
    %161 = arith.andi %155, %160 : vector<16x1xi32>
    %c0_i32_44 = arith.constant 0 : i32
    %162 = vector.broadcast %c0_i32_44 : i32 to vector<16x1xi32>
    %163 = arith.cmpi sge, %161, %162 : vector<16x1xi32>
    %c2147483647_i32_45 = arith.constant 2147483647 : i32
    %164 = vector.broadcast %c2147483647_i32_45 : i32 to vector<16x1xi32>
    %165 = arith.xori %161, %164 : vector<16x1xi32>
    %166 = arith.select %163, %161, %165 : vector<16x1xi1>, vector<16x1xi32>
    %167 = tpu.bitcast %166 : vector<16x1xi32> -> vector<16x1xf32>
    %168 = arith.subf %167, %35 : vector<16x1xf32>
    %169 = math.exp %168 : vector<16x1xf32>
    %170 = arith.mulf %169, %43 : vector<16x1xf32>
    %c4_i32 = arith.constant 4 : i32
    %171 = vector.broadcast %c4_i32 : i32 to vector<16x6xi32>
    %172 = arith.cmpi eq, %19, %171 : vector<16x6xi32>
    %173 = vector.shape_cast %170 : vector<16x1xf32> to vector<16x1xf32>
    %174 = vector.broadcast %173 : vector<16x1xf32> to vector<16x6xf32>
    %175 = arith.select %172, %174, %144 : vector<16x6xi1>, vector<16x6xf32>
    %c4_i32_46 = arith.constant 4 : i32
    %176 = vector.broadcast %c4_i32_46 : i32 to vector<16x6xi32>
    %177 = arith.cmpi eq, %19, %176 : vector<16x6xi32>
    %178 = vector.shape_cast %159 : vector<16x1xi32> to vector<16x1xi32>
    %179 = vector.broadcast %178 : vector<16x1xi32> to vector<16x6xi32>
    %180 = arith.select %177, %179, %149 : vector<16x6xi1>, vector<16x6xi32>
    %181 = vector.broadcast %159 : vector<16x1xi32> to vector<16x128xi32>
    %182 = arith.cmpi eq, %3, %181 : vector<16x128xi32>
    %c-2147483648_i32_47 = arith.constant -2147483648 : i32
    %183 = vector.broadcast %c-2147483648_i32_47 : i32 to vector<16x128xi32>
    %184 = arith.select %182, %183, %153 : vector<16x128xi1>, vector<16x128xi32>
    %cst_48 = arith.constant dense<-2147483648> : vector<16xi32>
    %185 = vector.multi_reduction <maxsi>, %184, %cst_48 [1] : vector<16x128xi32> to vector<16xi32>
    %186 = vector.shape_cast %185 : vector<16xi32> to vector<16x1xi32>
    %c127_i32_49 = arith.constant 127 : i32
    %187 = vector.broadcast %c127_i32_49 : i32 to vector<16x1xi32>
    %188 = arith.andi %186, %187 : vector<16x1xi32>
    %c127_i32_50 = arith.constant 127 : i32
    %189 = vector.broadcast %c127_i32_50 : i32 to vector<16x1xi32>
    %190 = arith.subi %189, %188 : vector<16x1xi32>
    %c-128_i32_51 = arith.constant -128 : i32
    %191 = vector.broadcast %c-128_i32_51 : i32 to vector<16x1xi32>
    %192 = arith.andi %186, %191 : vector<16x1xi32>
    %c0_i32_52 = arith.constant 0 : i32
    %193 = vector.broadcast %c0_i32_52 : i32 to vector<16x1xi32>
    %194 = arith.cmpi sge, %192, %193 : vector<16x1xi32>
    %c2147483647_i32_53 = arith.constant 2147483647 : i32
    %195 = vector.broadcast %c2147483647_i32_53 : i32 to vector<16x1xi32>
    %196 = arith.xori %192, %195 : vector<16x1xi32>
    %197 = arith.select %194, %192, %196 : vector<16x1xi1>, vector<16x1xi32>
    %198 = tpu.bitcast %197 : vector<16x1xi32> -> vector<16x1xf32>
    %199 = arith.subf %198, %35 : vector<16x1xf32>
    %200 = math.exp %199 : vector<16x1xf32>
    %201 = arith.mulf %200, %43 : vector<16x1xf32>
    %c5_i32 = arith.constant 5 : i32
    %202 = vector.broadcast %c5_i32 : i32 to vector<16x6xi32>
    %203 = arith.cmpi eq, %19, %202 : vector<16x6xi32>
    %204 = vector.shape_cast %201 : vector<16x1xf32> to vector<16x1xf32>
    %205 = vector.broadcast %204 : vector<16x1xf32> to vector<16x6xf32>
    %206 = arith.select %203, %205, %175 : vector<16x6xi1>, vector<16x6xf32>
    %c5_i32_54 = arith.constant 5 : i32
    %207 = vector.broadcast %c5_i32_54 : i32 to vector<16x6xi32>
    %208 = arith.cmpi eq, %19, %207 : vector<16x6xi32>
    %209 = vector.shape_cast %190 : vector<16x1xi32> to vector<16x1xi32>
    %210 = vector.broadcast %209 : vector<16x1xi32> to vector<16x6xi32>
    %211 = arith.select %208, %210, %180 : vector<16x6xi1>, vector<16x6xi32>
    %cst_55 = arith.constant 1.000000e+00 : f32
    %212 = vector.broadcast %cst_55 : f32 to vector<16x6xf32>
    %213 = arith.mulf %206, %212 : vector<16x6xf32>
    %214 = arith.truncf %213 : vector<16x6xf32> to vector<16x6xbf16>
    %c0_56 = arith.constant 0 : index
    %c0_57 = arith.constant 0 : index
    %215 = vector.load %arg3[%c0_56, %c0_57] : memref<16x6xbf16, #tpu.memory_space<vmem>>, vector<16x6xbf16>
    tpu.vector_store %arg3[%c0_56, %c0_57], %214 {strides = array<i32>} : memref<16x6xbf16, #tpu.memory_space<vmem>>, vector<16x6xbf16>,
    %c0_58 = arith.constant 0 : index
    %c0_59 = arith.constant 0 : index
    %216 = vector.load %arg4[%c0_58, %c0_59] : memref<16x6xi32, #tpu.memory_space<vmem>>, vector<16x6xi32>
    tpu.vector_store %arg4[%c0_58, %c0_59], %211 {strides = array<i32>} : memref<16x6xi32, #tpu.memory_space<vmem>>, vector<16x6xi32>,
    return
  }
  func.func @transform_0(%arg0: i32) -> (i32, i32) {
    %c0_i32 = arith.constant 0 : i32
    %c0_i32_0 = arith.constant 0 : i32
    return %arg0, %c0_i32 : i32, i32
  }
  func.func @transform_1(%arg0: i32) -> (i32, i32) {
    %c0_i32 = arith.constant 0 : i32
    %c0_i32_0 = arith.constant 0 : i32
    %c0_i32_1 = arith.constant 0 : i32
    return %c0_i32, %c0_i32_0 : i32, i32
  }
  func.func @transform_2(%arg0: i32) -> (i32, i32) {
    %c0_i32 = arith.constant 0 : i32
    %c0_i32_0 = arith.constant 0 : i32
    return %arg0, %c0_i32 : i32, i32
  }
  func.func @transform_3(%arg0: i32) -> (i32, i32) {
    %c0_i32 = arith.constant 0 : i32
    %c0_i32_0 = arith.constant 0 : i32
    return %arg0, %c0_i32 : i32, i32
  }
}

</mosaic_0001>

<llo_original>
// kernel: tpu_custom_call.1
$region0: #{tpu_custom_call.1}
  #allocation0 [shape = 'u32[]', space=smem, size = 0x4, offset = 0x4, fixed_abs, tag = 'smem constant byte address 0x4 - core index']
  #allocation1 [shape = 'u32[144,128]{1,0:T(1,128)}', space=vmem, size = 0x12000, scoped, tag = 'internal scratch']
  %s0 = inlined_call_operand.hbm [shape: bf16[16,256], index: 0, kind: input, shape index: {}]
  %s1 = inlined_call_operand.hbm [shape: bf16[256,128], index: 1, kind: input, shape index: {}]
  %s2 = inlined_call_operand.vmem [shape: bf16[16,6], index: 2, kind: output, shape index: {0}]
  %s3 = inlined_call_operand.vmem [shape: s32[16,6], index: 3, kind: output, shape index: {1}]
  %4 = xla_tuple %s2, %s3
  %s5 = sld [smem:[#allocation0]]
  $region34: #{tpu_custom_call.1} parent=0
    _
  %s7 = ssub.s32 1, %s5
  %s8 = scalar_select 0, %s7, %s5
  $region1: #{tpu_custom_call.1} parent=0
    #allocation2 [shape = 'u8[8192]{0}', space=vmem, size = 0x2000, scoped, tag = 'input window, operand 0, single buffered']
    #allocation3 [shape = 's32[1]{0}', space=sflag, size = 0x4, scoped, tag = 'scoped memory for tpu_custom_call.1']
    #allocation4 [shape = 'u8[65536]{0}', space=vmem, size = 0x10000, scoped, tag = 'input window, operand 1, single buffered']
    #allocation5 [shape = 's32[1]{0}', space=sflag, size = 0x4, scoped, tag = 'scoped memory for tpu_custom_call.1']
    %9 = vsyncpa [#allocation3], 0
    %10 = vsyncpa [#allocation5], 0
    // Predicated region
    $region2: #{tpu_custom_call.1} parent=1 // pred_check
      _
    $region3: #{tpu_custom_call.1} parent=1 // pred_check_branch
      %12 = sbr.rel (0) target = $region5
    $region4: #{tpu_custom_call.1} parent=1 // pred_region
      %s14 = ssub.s32 256, 256
      %15 = vsyncadd [#allocation3], %s14
      %s16 = sshll.u32 [#allocation2], 4
      %s17 = int_to_ptr.vmem [resolvable:$true] %s16
      %22 = dma.hbm_to_vmem [thread:$0]  %s0, 256, %s17, [#allocation3], 128, 128, 8
    $region5: #{tpu_custom_call.1} parent=1 // pred_fallthru
      _
    // Predicated region
    $region6: #{tpu_custom_call.1} parent=1 // pred_check
      _
    $region7: #{tpu_custom_call.1} parent=1 // pred_check_branch
      %24 = sbr.rel (0) target = $region9
    $region8: #{tpu_custom_call.1} parent=1 // pred_region
      %s26 = ssub.s32 2048, 2048
      %27 = vsyncadd [#allocation5], %s26
      %s28 = sshll.u32 [#allocation4], 4
      %s29 = int_to_ptr.vmem [resolvable:$true] %s28
      %34 = dma.hbm_to_vmem [thread:$0]  %s1, 2048, %s29, [#allocation5], 64, 64, 4
    $region9: #{tpu_custom_call.1} parent=1 // pred_fallthru
      _
    // Predicated region
    $region10: #{tpu_custom_call.1} parent=1 // pred_check
      _
    $region11: #{tpu_custom_call.1} parent=1 // pred_check_branch
      %36 = sbr.rel (0) target = $region13
    $region12: #{tpu_custom_call.1} parent=1 // pred_region
      %37 = dma.done [#allocation3], 256
    $region13: #{tpu_custom_call.1} parent=1 // pred_fallthru
      _
    // Predicated region
    $region14: #{tpu_custom_call.1} parent=1 // pred_check
      _
    $region15: #{tpu_custom_call.1} parent=1 // pred_check_branch
      %39 = sbr.rel (0) target = $region17
    $region16: #{tpu_custom_call.1} parent=1 // pred_region
      %40 = dma.done [#allocation5], 2048
    $region17: #{tpu_custom_call.1} parent=1 // pred_fallthru
      _
    %v42 = vld [vmem:[#allocation2] sm:$0xff]
    %v43 = vld [vmem:[#allocation2 + $0x8] sm:$0xff]
    %v44 = vld [vmem:[#allocation4] sm:$0xf]
    %v45 = vld [vmem:[#allocation4 + $0x4] sm:$0xf]
    %v46 = vld [vmem:[#allocation4 + $0x8] sm:$0xf]
    %v47 = vld [vmem:[#allocation4 + $0xc] sm:$0xf]
    %v48 = vld [vmem:[#allocation4 + $0x10] sm:$0xf]
    %v49 = vld [vmem:[#allocation4 + $0x14] sm:$0xf]
    %v50 = vld [vmem:[#allocation4 + $0x18] sm:$0xf]
    %v51 = vld [vmem:[#allocation4 + $0x1c] sm:$0xf]
    %v52 = vld [vmem:[#allocation4 + $0x20] sm:$0xf]
    %v53 = vld [vmem:[#allocation4 + $0x24] sm:$0xf]
    %v54 = vld [vmem:[#allocation4 + $0x28] sm:$0xf]
    %v55 = vld [vmem:[#allocation4 + $0x2c] sm:$0xf]
    %v56 = vld [vmem:[#allocation4 + $0x30] sm:$0xf]
    %v57 = vld [vmem:[#allocation4 + $0x34] sm:$0xf]
    %v58 = vld [vmem:[#allocation4 + $0x38] sm:$0xf]
    %v59 = vld [vmem:[#allocation4 + $0x3c] sm:$0xf]
    %v60 = vld [vmem:[#allocation4 + $0x40] sm:$0xf]
    %v61 = vld [vmem:[#allocation4 + $0x44] sm:$0xf]
    %v62 = vld [vmem:[#allocation4 + $0x48] sm:$0xf]
    %v63 = vld [vmem:[#allocation4 + $0x4c] sm:$0xf]
    %v64 = vld [vmem:[#allocation4 + $0x50] sm:$0xf]
    %v65 = vld [vmem:[#allocation4 + $0x54] sm:$0xf]
    %v66 = vld [vmem:[#allocation4 + $0x58] sm:$0xf]
    %v67 = vld [vmem:[#allocation4 + $0x5c] sm:$0xf]
    %v68 = vld [vmem:[#allocation4 + $0x60] sm:$0xf]
    %v69 = vld [vmem:[#allocation4 + $0x64] sm:$0xf]
    %v70 = vld [vmem:[#allocation4 + $0x68] sm:$0xf]
    %v71 = vld [vmem:[#allocation4 + $0x6c] sm:$0xf]
    %v72 = vld [vmem:[#allocation4 + $0x70] sm:$0xf]
    %v73 = vld [vmem:[#allocation4 + $0x74] sm:$0xf]
    %v74 = vld [vmem:[#allocation4 + $0x78] sm:$0xf]
    %v75 = vld [vmem:[#allocation4 + $0x7c] sm:$0xf]
    %v78 = vunpack.c.l.b16 %v42
    %v79 = vunpack.c.h.b16 %v42
    %v80 = vunpack.c.l.b16 %v43
    %v81 = vunpack.c.h.b16 %v43
    %v82 = vpack.c.b16 %v80, %v78
    %v83 = vpack.c.b16 %v81, %v79
    %v118 = vunpack.c.l.b16 %v44
    %v119 = vunpack.c.l.b16 %v45
    %v120 = vunpack.c.l.b16 %v46
    %v121 = vunpack.c.l.b16 %v47
    %v122 = vunpack.c.l.b16 %v48
    %v123 = vunpack.c.l.b16 %v49
    %v124 = vunpack.c.l.b16 %v50
    %v125 = vunpack.c.l.b16 %v51
    %v126 = vunpack.c.l.b16 %v52
    %v127 = vunpack.c.l.b16 %v53
    %v128 = vunpack.c.l.b16 %v54
    %v129 = vunpack.c.l.b16 %v55
    %v130 = vunpack.c.l.b16 %v56
    %v131 = vunpack.c.l.b16 %v57
    %v132 = vunpack.c.l.b16 %v58
    %v133 = vunpack.c.l.b16 %v59
    %v134 = vunpack.c.l.b16 %v60
    %v135 = vunpack.c.l.b16 %v61
    %v136 = vunpack.c.l.b16 %v62
    %v137 = vunpack.c.l.b16 %v63
    %v138 = vunpack.c.l.b16 %v64
    %v139 = vunpack.c.l.b16 %v65
    %v140 = vunpack.c.l.b16 %v66
    %v141 = vunpack.c.l.b16 %v67
    %v142 = vunpack.c.l.b16 %v68
    %v143 = vunpack.c.l.b16 %v69
    %v144 = vunpack.c.l.b16 %v70
    %v145 = vunpack.c.l.b16 %v71
    %v146 = vunpack.c.l.b16 %v72
    %v147 = vunpack.c.l.b16 %v73
    %v148 = vunpack.c.l.b16 %v74
    %v149 = vunpack.c.l.b16 %v75
    %v150 = vpack.c.b16 %v119, %v118
    %v151 = vpack.c.b16 %v121, %v120
    %v152 = vpack.c.b16 %v123, %v122
    %v153 = vpack.c.b16 %v125, %v124
    %v154 = vpack.c.b16 %v127, %v126
    %v155 = vpack.c.b16 %v129, %v128
    %v156 = vpack.c.b16 %v131, %v130
    %v157 = vpack.c.b16 %v133, %v132
    %v158 = vpack.c.b16 %v135, %v134
    %v159 = vpack.c.b16 %v137, %v136
    %v160 = vpack.c.b16 %v139, %v138
    %v161 = vpack.c.b16 %v141, %v140
    %v162 = vpack.c.b16 %v143, %v142
    %v163 = vpack.c.b16 %v145, %v144
    %v164 = vpack.c.b16 %v147, %v146
    %v165 = vpack.c.b16 %v149, %v148
    %182 = vmatprep.subr.bf16.mxu0 0
    %183 = vmatpush1.bf16.msra.mxu0 %v150
    %184 = vmatprep.subr.bf16.mxu0 0
    %185 = vmatpush1.bf16.msra.mxu0 %v151
    %186 = vmatprep.subr.bf16.mxu0 0
    %187 = vmatpush1.bf16.msra.mxu0 %v152
    %188 = vmatprep.subr.bf16.mxu0 0
    %189 = vmatpush1.bf16.msra.mxu0 %v153
    %190 = vmatprep.subr.bf16.mxu0 0
    %191 = vmatpush1.bf16.msra.mxu0 %v154
    %192 = vmatprep.subr.bf16.mxu0 0
    %193 = vmatpush1.bf16.msra.mxu0 %v155
    %194 = vmatprep.subr.bf16.mxu0 0
    %195 = vmatpush1.bf16.msra.mxu0 %v156
    %196 = vmatprep.subr.bf16.mxu0 0
    %197 = vmatpush1.bf16.msra.mxu0 %v157
    %198 = vmatprep.subr.bf16.mxu0 0
    %199 = vmatpush1.bf16.msra.mxu0 %v158
    %200 = vmatprep.subr.bf16.mxu0 0
    %201 = vmatpush1.bf16.msra.mxu0 %v159
    %202 = vmatprep.subr.bf16.mxu0 0
    %203 = vmatpush1.bf16.msra.mxu0 %v160
    %204 = vmatprep.subr.bf16.mxu0 0
    %205 = vmatpush1.bf16.msra.mxu0 %v161
    %206 = vmatprep.subr.bf16.mxu0 0
    %207 = vmatpush1.bf16.msra.mxu0 %v162
    %208 = vmatprep.subr.bf16.mxu0 0
    %209 = vmatpush1.bf16.msra.mxu0 %v163
    %210 = vmatprep.subr.bf16.mxu0 0
    %211 = vmatpush1.bf16.msra.mxu0 %v164
    %212 = vmatprep.subr.bf16.mxu0 0
    %213 = vmatpush1.bf16.msra.mxu0 %v165
    %214 = vmatprep.mubr.bf16.mxu0 %v83
    %215 = vmatmul.mubr.bf16.gmra.mrb[0].mxu0 %v82
    %v216 = vpop.f32.mrb[0].mxu0
    %v217 = vadd.f32 0.0, %v216
    %v218 = vpop.f32.mrb[0].mxu0
    %v219 = vpop.f32.mrb[0].mxu0
    %v220 = vadd.f32 0.0, %v219
    %v221 = vpop.f32.mrb[0].mxu0
    %222 = vdwg.mxu0
    %v223 = vlaneseq
    %v224 = vand.u32 %v223, 127
    %vm225 = vcmp.lt.s32.totalorder %v224, 64
    %vm228 = vcmp.ge.s32.totalorder %v217, 0
    %vm229 = vcmp.ge.s32.totalorder %v220, 0
    %v230 = vxor.u32 %v217, 2147483647
    %v231 = vxor.u32 %v220, 2147483647
    %v232 = vsel %vm228, %v217, %v230
    %v233 = vsel %vm229, %v220, %v231
    %v234 = vand.u32 %v232, 4294967168
    %v235 = vand.u32 %v233, 4294967168
    %v236 = vsub.s32 127, %v224
    %v237 = vor.u32 %v234, %v236
    %v238 = vor.u32 %v235, %v236
    %v239 = vsel %vm225, %v237, 2147483648
    %v240 = vsel %vm225, %v238, 2147483648
    %v241 = vand.u32 %v239, 65535
    %v242 = vshra.s32 %v239, 16
    %v243 = vcvt.s32.f32 %v241
    %v244 = vcvt.s32.f32 %v242
    %245 = vmax.xlane.f32.xlu0 %v244
    %v246 = vpop.xlane.xlu0 %245
    %vm247 = vcmp.eq.f32.partialorder %v244, %v246
    %v248 = vsel %vm247, %v243, -inf
    %249 = vmax.xlane.f32.xlu0 %v248
    %v250 = vpop.xlane.xlu0 %249
    %v251 = vcvt.f32.s32 %v250
    %v252 = vcvt.f32.s32 %v246
    %v253 = vshll.u32 %v252, 16
    %v254 = vadd.s32 %v253, %v251
    %v255 = vand.u32 %v240, 65535
    %v256 = vshra.s32 %v240, 16
    %v257 = vcvt.s32.f32 %v255
    %v258 = vcvt.s32.f32 %v256
    %259 = vmax.xlane.f32.xlu0 %v258
    %v260 = vpop.xlane.xlu0 %259
    %vm261 = vcmp.eq.f32.partialorder %v258, %v260
    %v262 = vsel %vm261, %v257, -inf
    %263 = vmax.xlane.f32.xlu0 %v262
    %v264 = vpop.xlane.xlu0 %263
    %v265 = vcvt.f32.s32 %v264
    %v266 = vcvt.f32.s32 %v260
    %v267 = vshll.u32 %v266, 16
    %v268 = vadd.s32 %v267, %v265
    %v269 = vand.u32 %v254, 127
    %v270 = vand.u32 %v268, 127
    %v271 = vsub.s32 127, %v269
    %v272 = vsub.s32 127, %v270
    %v273 = vand.u32 %v254, 4294967168
    %v274 = vand.u32 %v268, 4294967168
    %vm275 = vcmp.ge.s32.totalorder %v273, 0
    %vm276 = vcmp.ge.s32.totalorder %v274, 0
    %v277 = vxor.u32 %v273, 2147483647
    %v278 = vxor.u32 %v274, 2147483647
    %v279 = vsel %vm275, %v273, %v277
    %v280 = vsel %vm276, %v274, %v278
    %v283 = vsub.f32 %v217, %v279
    %v284 = vsub.f32 %v220, %v280
    %v285 = vmul.f32 %v283, 1.442695
    %v286 = vpow.pop %v285
    %v287 = vmul.f32 %v284, 1.442695
    %v288 = vpow.pop %v287
    %v289 = vsel %vm225, %v286, 0.0
    %v290 = vsel %vm225, %v288, 0.0
    %291 = vadd.xlane.f32.xlu0 %v289
    %v292 = vpop.xlane.xlu0 %291
    %293 = vadd.xlane.f32.xlu0 %v290
    %v294 = vpop.xlane.xlu0 %293
    %v295 = vrcp.pop %v292
    %v296 = vrcp.pop %v294
    %v297 = vsub.f32 %v279, %v279
    %v298 = vsub.f32 %v280, %v280
    %v299 = vmul.f32 %v297, 1.442695
    %v300 = vpow.pop %v299
    %v301 = vmul.f32 %v298, 1.442695
    %v302 = vpow.pop %v301
    %v303 = vmul.f32 %v300, %v295
    %v304 = vmul.f32 %v302, %v296
    %vm305 = vcmp.eq.s32.totalorder %v224, 0
    %v306 = vsel %vm305, %v303, 0.0
    %v307 = vsel %vm305, %v304, 0.0
    %v308 = vsel %vm305, %v271, 0
    %v309 = vsel %vm305, %v272, 0
    %vm310 = vcmp.eq.s32.totalorder %v224, %v271
    %vm311 = vcmp.eq.s32.totalorder %v224, %v272
    %v312 = vsel %vm310, 2147483648, %v239
    %v313 = vsel %vm311, 2147483648, %v240
    %v314 = vand.u32 %v312, 65535
    %v315 = vshra.s32 %v312, 16
    %v316 = vcvt.s32.f32 %v314
    %v317 = vcvt.s32.f32 %v315
    %318 = vmax.xlane.f32.xlu0 %v317
    %v319 = vpop.xlane.xlu0 %318
    %vm320 = vcmp.eq.f32.partialorder %v317, %v319
    %v321 = vsel %vm320, %v316, -inf
    %322 = vmax.xlane.f32.xlu0 %v321
    %v323 = vpop.xlane.xlu0 %322
    %v324 = vcvt.f32.s32 %v323
    %v325 = vcvt.f32.s32 %v319
    %v326 = vshll.u32 %v325, 16
    %v327 = vadd.s32 %v326, %v324
    %v328 = vand.u32 %v313, 65535
    %v329 = vshra.s32 %v313, 16
    %v330 = vcvt.s32.f32 %v328
    %v331 = vcvt.s32.f32 %v329
    %332 = vmax.xlane.f32.xlu0 %v331
    %v333 = vpop.xlane.xlu0 %332
    %vm334 = vcmp.eq.f32.partialorder %v331, %v333
    %v335 = vsel %vm334, %v330, -inf
    %336 = vmax.xlane.f32.xlu0 %v335
    %v337 = vpop.xlane.xlu0 %336
    %v338 = vcvt.f32.s32 %v337
    %v339 = vcvt.f32.s32 %v333
    %v340 = vshll.u32 %v339, 16
    %v341 = vadd.s32 %v340, %v338
    %v342 = vand.u32 %v327, 127
    %v343 = vand.u32 %v341, 127
    %v344 = vsub.s32 127, %v342
    %v345 = vsub.s32 127, %v343
    %v346 = vand.u32 %v327, 4294967168
    %v347 = vand.u32 %v341, 4294967168
    %vm348 = vcmp.ge.s32.totalorder %v346, 0
    %vm349 = vcmp.ge.s32.totalorder %v347, 0
    %v350 = vxor.u32 %v346, 2147483647
    %v351 = vxor.u32 %v347, 2147483647
    %v352 = vsel %vm348, %v346, %v350
    %v353 = vsel %vm349, %v347, %v351
    %v356 = vsub.f32 %v352, %v279
    %v357 = vsub.f32 %v353, %v280
    %v358 = vmul.f32 %v356, 1.442695
    %v359 = vpow.pop %v358
    %v360 = vmul.f32 %v357, 1.442695
    %v361 = vpow.pop %v360
    %v362 = vmul.f32 %v359, %v295
    %v363 = vmul.f32 %v361, %v296
    %vm364 = vcmp.eq.s32.totalorder %v224, 1
    %v365 = vsel %vm364, %v362, %v306
    %v366 = vsel %vm364, %v363, %v307
    %v367 = vsel %vm364, %v344, %v308
    %v368 = vsel %vm364, %v345, %v309
    %vm369 = vcmp.eq.s32.totalorder %v224, %v344
    %vm370 = vcmp.eq.s32.totalorder %v224, %v345
    %v371 = vsel %vm369, 2147483648, %v312
    %v372 = vsel %vm370, 2147483648, %v313
    %v373 = vand.u32 %v371, 65535
    %v374 = vshra.s32 %v371, 16
    %v375 = vcvt.s32.f32 %v373
    %v376 = vcvt.s32.f32 %v374
    %377 = vmax.xlane.f32.xlu0 %v376
    %v378 = vpop.xlane.xlu0 %377
    %vm379 = vcmp.eq.f32.partialorder %v376, %v378
    %v380 = vsel %vm379, %v375, -inf
    %381 = vmax.xlane.f32.xlu0 %v380
    %v382 = vpop.xlane.xlu0 %381
    %v383 = vcvt.f32.s32 %v382
    %v384 = vcvt.f32.s32 %v378
    %v385 = vshll.u32 %v384, 16
    %v386 = vadd.s32 %v385, %v383
    %v387 = vand.u32 %v372, 65535
    %v388 = vshra.s32 %v372, 16
    %v389 = vcvt.s32.f32 %v387
    %v390 = vcvt.s32.f32 %v388
    %391 = vmax.xlane.f32.xlu0 %v390
    %v392 = vpop.xlane.xlu0 %391
    %vm393 = vcmp.eq.f32.partialorder %v390, %v392
    %v394 = vsel %vm393, %v389, -inf
    %395 = vmax.xlane.f32.xlu0 %v394
    %v396 = vpop.xlane.xlu0 %395
    %v397 = vcvt.f32.s32 %v396
    %v398 = vcvt.f32.s32 %v392
    %v399 = vshll.u32 %v398, 16
    %v400 = vadd.s32 %v399, %v397
    %v401 = vand.u32 %v386, 127
    %v402 = vand.u32 %v400, 127
    %v403 = vsub.s32 127, %v401
    %v404 = vsub.s32 127, %v402
    %v405 = vand.u32 %v386, 4294967168
    %v406 = vand.u32 %v400, 4294967168
    %vm407 = vcmp.ge.s32.totalorder %v405, 0
    %vm408 = vcmp.ge.s32.totalorder %v406, 0
    %v409 = vxor.u32 %v405, 2147483647
    %v410 = vxor.u32 %v406, 2147483647
    %v411 = vsel %vm407, %v405, %v409
    %v412 = vsel %vm408, %v406, %v410
    %v415 = vsub.f32 %v411, %v279
    %v416 = vsub.f32 %v412, %v280
    %v417 = vmul.f32 %v415, 1.442695
    %v418 = vpow.pop %v417
    %v419 = vmul.f32 %v416, 1.442695
    %v420 = vpow.pop %v419
    %v421 = vmul.f32 %v418, %v295
    %v422 = vmul.f32 %v420, %v296
    %vm423 = vcmp.eq.s32.totalorder %v224, 2
    %v424 = vsel %vm423, %v421, %v365
    %v425 = vsel %vm423, %v422, %v366
    %v426 = vsel %vm423, %v403, %v367
    %v427 = vsel %vm423, %v404, %v368
    %vm428 = vcmp.eq.s32.totalorder %v224, %v403
    %vm429 = vcmp.eq.s32.totalorder %v224, %v404
    %v430 = vsel %vm428, 2147483648, %v371
    %v431 = vsel %vm429, 2147483648, %v372
    %v432 = vand.u32 %v430, 65535
    %v433 = vshra.s32 %v430, 16
    %v434 = vcvt.s32.f32 %v432
    %v435 = vcvt.s32.f32 %v433
    %436 = vmax.xlane.f32.xlu0 %v435
    %v437 = vpop.xlane.xlu0 %436
    %vm438 = vcmp.eq.f32.partialorder %v435, %v437
    %v439 = vsel %vm438, %v434, -inf
    %440 = vmax.xlane.f32.xlu0 %v439
    %v441 = vpop.xlane.xlu0 %440
    %v442 = vcvt.f32.s32 %v441
    %v443 = vcvt.f32.s32 %v437
    %v444 = vshll.u32 %v443, 16
    %v445 = vadd.s32 %v444, %v442
    %v446 = vand.u32 %v431, 65535
    %v447 = vshra.s32 %v431, 16
    %v448 = vcvt.s32.f32 %v446
    %v449 = vcvt.s32.f32 %v447
    %450 = vmax.xlane.f32.xlu0 %v449
    %v451 = vpop.xlane.xlu0 %450
    %vm452 = vcmp.eq.f32.partialorder %v449, %v451
    %v453 = vsel %vm452, %v448, -inf
    %454 = vmax.xlane.f32.xlu0 %v453
    %v455 = vpop.xlane.xlu0 %454
    %v456 = vcvt.f32.s32 %v455
    %v457 = vcvt.f32.s32 %v451
    %v458 = vshll.u32 %v457, 16
    %v459 = vadd.s32 %v458, %v456
    %v460 = vand.u32 %v445, 127
    %v461 = vand.u32 %v459, 127
    %v462 = vsub.s32 127, %v460
    %v463 = vsub.s32 127, %v461
    %v464 = vand.u32 %v445, 4294967168
    %v465 = vand.u32 %v459, 4294967168
    %vm466 = vcmp.ge.s32.totalorder %v464, 0
    %vm467 = vcmp.ge.s32.totalorder %v465, 0
    %v468 = vxor.u32 %v464, 2147483647
    %v469 = vxor.u32 %v465, 2147483647
    %v470 = vsel %vm466, %v464, %v468
    %v471 = vsel %vm467, %v465, %v469
    %v474 = vsub.f32 %v470, %v279
    %v475 = vsub.f32 %v471, %v280
    %v476 = vmul.f32 %v474, 1.442695
    %v477 = vpow.pop %v476
    %v478 = vmul.f32 %v475, 1.442695
    %v479 = vpow.pop %v478
    %v480 = vmul.f32 %v477, %v295
    %v481 = vmul.f32 %v479, %v296
    %vm482 = vcmp.eq.s32.totalorder %v224, 3
    %v483 = vsel %vm482, %v480, %v424
    %v484 = vsel %vm482, %v481, %v425
    %v485 = vsel %vm482, %v462, %v426
    %v486 = vsel %vm482, %v463, %v427
    %vm487 = vcmp.eq.s32.totalorder %v224, %v462
    %vm488 = vcmp.eq.s32.totalorder %v224, %v463
    %v489 = vsel %vm487, 2147483648, %v430
    %v490 = vsel %vm488, 2147483648, %v431
    %v491 = vand.u32 %v489, 65535
    %v492 = vshra.s32 %v489, 16
    %v493 = vcvt.s32.f32 %v491
    %v494 = vcvt.s32.f32 %v492
    %495 = vmax.xlane.f32.xlu0 %v494
    %v496 = vpop.xlane.xlu0 %495
    %vm497 = vcmp.eq.f32.partialorder %v494, %v496
    %v498 = vsel %vm497, %v493, -inf
    %499 = vmax.xlane.f32.xlu0 %v498
    %v500 = vpop.xlane.xlu0 %499
    %v501 = vcvt.f32.s32 %v500
    %v502 = vcvt.f32.s32 %v496
    %v503 = vshll.u32 %v502, 16
    %v504 = vadd.s32 %v503, %v501
    %v505 = vand.u32 %v490, 65535
    %v506 = vshra.s32 %v490, 16
    %v507 = vcvt.s32.f32 %v505
    %v508 = vcvt.s32.f32 %v506
    %509 = vmax.xlane.f32.xlu0 %v508
    %v510 = vpop.xlane.xlu0 %509
    %vm511 = vcmp.eq.f32.partialorder %v508, %v510
    %v512 = vsel %vm511, %v507, -inf
    %513 = vmax.xlane.f32.xlu0 %v512
    %v514 = vpop.xlane.xlu0 %513
    %v515 = vcvt.f32.s32 %v514
    %v516 = vcvt.f32.s32 %v510
    %v517 = vshll.u32 %v516, 16
    %v518 = vadd.s32 %v517, %v515
    %v519 = vand.u32 %v504, 127
    %v520 = vand.u32 %v518, 127
    %v521 = vsub.s32 127, %v519
    %v522 = vsub.s32 127, %v520
    %v523 = vand.u32 %v504, 4294967168
    %v524 = vand.u32 %v518, 4294967168
    %vm525 = vcmp.ge.s32.totalorder %v523, 0
    %vm526 = vcmp.ge.s32.totalorder %v524, 0
    %v527 = vxor.u32 %v523, 2147483647
    %v528 = vxor.u32 %v524, 2147483647
    %v529 = vsel %vm525, %v523, %v527
    %v530 = vsel %vm526, %v524, %v528
    %v533 = vsub.f32 %v529, %v279
    %v534 = vsub.f32 %v530, %v280
    %v535 = vmul.f32 %v533, 1.442695
    %v536 = vpow.pop %v535
    %v537 = vmul.f32 %v534, 1.442695
    %v538 = vpow.pop %v537
    %v539 = vmul.f32 %v536, %v295
    %v540 = vmul.f32 %v538, %v296
    %vm541 = vcmp.eq.s32.totalorder %v224, 4
    %v542 = vsel %vm541, %v539, %v483
    %v543 = vsel %vm541, %v540, %v484
    %v544 = vsel %vm541, %v521, %v485
    %v545 = vsel %vm541, %v522, %v486
    %vm546 = vcmp.eq.s32.totalorder %v224, %v521
    %vm547 = vcmp.eq.s32.totalorder %v224, %v522
    %v548 = vsel %vm546, 2147483648, %v489
    %v549 = vsel %vm547, 2147483648, %v490
    %v550 = vand.u32 %v548, 65535
    %v551 = vshra.s32 %v548, 16
    %v552 = vcvt.s32.f32 %v550
    %v553 = vcvt.s32.f32 %v551
    %554 = vmax.xlane.f32.xlu0 %v553
    %v555 = vpop.xlane.xlu0 %554
    %vm556 = vcmp.eq.f32.partialorder %v553, %v555
    %v557 = vsel %vm556, %v552, -inf
    %558 = vmax.xlane.f32.xlu0 %v557
    %v559 = vpop.xlane.xlu0 %558
    %v560 = vcvt.f32.s32 %v559
    %v561 = vcvt.f32.s32 %v555
    %v562 = vshll.u32 %v561, 16
    %v563 = vadd.s32 %v562, %v560
    %v564 = vand.u32 %v549, 65535
    %v565 = vshra.s32 %v549, 16
    %v566 = vcvt.s32.f32 %v564
    %v567 = vcvt.s32.f32 %v565
    %568 = vmax.xlane.f32.xlu0 %v567
    %v569 = vpop.xlane.xlu0 %568
    %vm570 = vcmp.eq.f32.partialorder %v567, %v569
    %v571 = vsel %vm570, %v566, -inf
    %572 = vmax.xlane.f32.xlu0 %v571
    %v573 = vpop.xlane.xlu0 %572
    %v574 = vcvt.f32.s32 %v573
    %v575 = vcvt.f32.s32 %v569
    %v576 = vshll.u32 %v575, 16
    %v577 = vadd.s32 %v576, %v574
    %v578 = vand.u32 %v563, 127
    %v579 = vand.u32 %v577, 127
    %v580 = vsub.s32 127, %v578
    %v581 = vsub.s32 127, %v579
    %v582 = vand.u32 %v563, 4294967168
    %v583 = vand.u32 %v577, 4294967168
    %vm584 = vcmp.ge.s32.totalorder %v582, 0
    %vm585 = vcmp.ge.s32.totalorder %v583, 0
    %v586 = vxor.u32 %v582, 2147483647
    %v587 = vxor.u32 %v583, 2147483647
    %v588 = vsel %vm584, %v582, %v586
    %v589 = vsel %vm585, %v583, %v587
    %v592 = vsub.f32 %v588, %v279
    %v593 = vsub.f32 %v589, %v280
    %v594 = vmul.f32 %v592, 1.442695
    %v595 = vpow.pop %v594
    %v596 = vmul.f32 %v593, 1.442695
    %v597 = vpow.pop %v596
    %v598 = vmul.f32 %v595, %v295
    %v599 = vmul.f32 %v597, %v296
    %vm600 = vcmp.eq.s32.totalorder %v224, 5
    %v601 = vsel %vm600, %v598, %v542
    %v602 = vsel %vm600, %v599, %v543
    %v603 = vsel %vm600, %v580, %v544
    %v604 = vsel %vm600, %v581, %v545
    %v605 = vpack.c.bf16 %v602, %v601
    %v607 = vunpack.c.l.b16 %v605
    %v608 = vunpack.c.h.b16 %v605
    %v609 = vpack.c.b16 %v607, %v607
    %v610 = vpack.c.b16 %v608, %v608
    %vm613 = vcmask 44032
    %614 = vst.msk [vmem:[%s2] sm:$0xf] %vm613, %v609
    %615 = vst.msk [vmem:[%s2 + $0x4] sm:$0xf] %vm613, %v610
    %vm616 = vcmask 48128
    %617 = vst.msk [vmem:[%s3] sm:$0xff] %vm616, %v603
    %618 = vst.msk [vmem:[%s3 + $0x8] sm:$0xff] %vm616, %v604
    // Predicated region
    $region18: #{tpu_custom_call.1} parent=1 // pred_check
      _
    $region19: #{tpu_custom_call.1} parent=1 // pred_check_branch
      %620 = sbr.rel (0) target = $region21
    $region20: #{tpu_custom_call.1} parent=1 // pred_region
      _
    $region21: #{tpu_custom_call.1} parent=1 // pred_fallthru
      _
    // Predicated region
    $region22: #{tpu_custom_call.1} parent=1 // pred_check
      _
    $region23: #{tpu_custom_call.1} parent=1 // pred_check_branch
      %622 = sbr.rel (0) target = $region25
    $region24: #{tpu_custom_call.1} parent=1 // pred_region
      _
    $region25: #{tpu_custom_call.1} parent=1 // pred_fallthru
      _
    // Predicated region
    $region26: #{tpu_custom_call.1} parent=1 // pred_check
      _
    $region27: #{tpu_custom_call.1} parent=1 // pred_check_branch
      %624 = sbr.rel (0) target = $region29
    $region28: #{tpu_custom_call.1} parent=1 // pred_region
      _
    $region29: #{tpu_custom_call.1} parent=1 // pred_fallthru
      _
    // Predicated region
    $region30: #{tpu_custom_call.1} parent=1 // pred_check
      _
    $region31: #{tpu_custom_call.1} parent=1 // pred_check_branch
      %626 = sbr.rel (0) target = $region33
    $region32: #{tpu_custom_call.1} parent=1 // pred_region
      _
    $region33: #{tpu_custom_call.1} parent=1 // pred_fallthru
      _
    %627 = vsyncpa [#allocation3], 1
    %628 = vsyncpa [#allocation5], 1

</llo_original>
